<compile_context>
chip_gen: v5e
topology: v5e:2x2
jax: 0.10.0
libtpu: 0.0.40
codegen_flags: <defaults>
</compile_context>

<pallas_src>
import functools

import jax
import jax.numpy as jnp
from jax import lax
from jax.experimental import pallas as pl
from jax.experimental.pallas import tpu as pltpu

_LANE = 128
_SUBLANE = 8
_MAX_TILE_ROWS = 2048  # 2048x128 f32 = 1 MiB per stream per buffer


def _valid_mask(tile_rows, blocks_per_shard, n_valid):
    """Boolean (tile_rows, 128) mask: True where the global element index < n_valid."""
    block_idx = pl.program_id(0) * blocks_per_shard + pl.program_id(1)
    base = block_idx * (tile_rows * _LANE)
    row = lax.broadcasted_iota(jnp.int32, (tile_rows, _LANE), 0)
    lane = lax.broadcasted_iota(jnp.int32, (tile_rows, _LANE), 1)
    return (base + row * _LANE + lane) < n_valid


def _bce_elem(pred_ref, gt_ref, valid):
    """Numerically stable BCEWithLogits, zeroed (and sanitized) outside `valid`."""
    x = jnp.where(valid, pred_ref[...].astype(jnp.float32), 0.0)
    y = jnp.where(valid, gt_ref[...].astype(jnp.float32), 0.0)
    # max(x, 0) - x*y + log(1 + exp(-|x|))   (matches torch)
    loss = jnp.maximum(x, 0.0) - x * y + jnp.log1p(jnp.exp(-jnp.abs(x)))
    return jnp.where(valid, loss, 0.0)


def _accumulate(out_ref, contrib, tile_rows):
    """Fold (tile_rows,128) contributions into the resident (1,8,128) accumulator."""
    @pl.when(pl.program_id(1) == 0)
    def _():
        out_ref[...] = jnp.zeros_like(out_ref)

    partial = contrib.reshape(tile_rows // _SUBLANE, _SUBLANE, _LANE).sum(axis=0)
    out_ref[...] += partial[None, :, :]


def _bce_sum_kernel(pred_ref, gt_ref, out_ref, *,
                    n_valid, tile_rows, blocks_per_shard):
    valid = _valid_mask(tile_rows, blocks_per_shard, n_valid)
    loss = _bce_elem(pred_ref, gt_ref, valid)
    _accumulate(out_ref, loss, tile_rows)


def _bce_sum_masked_kernel(pred_ref, gt_ref, mask_ref, out_ref, *,
                           n_valid, tile_rows, blocks_per_shard):
    valid = _valid_mask(tile_rows, blocks_per_shard, n_valid)
    loss = _bce_elem(pred_ref, gt_ref, valid)
    m = jnp.where(valid, mask_ref[...].astype(jnp.float32), 0.0)
    _accumulate(out_ref, loss * m, tile_rows)


def _to_slab(x):
    """Flatten to a lane-dense [rows, 128] slab; pad only if strictly needed."""
    flat = x.reshape(-1)
    n = flat.shape[0]
    chunk = _SUBLANE * _LANE
    padded = -(-n // chunk) * chunk
    if padded != n:
        flat = jnp.pad(flat, (0, padded - n))
    return flat.reshape(padded // _LANE, _LANE)


@jax.jit
def bce_loss(pred, gt, mask=None):
    """BCEWithLogitsLoss(reduction='none') [* mask], then mean over ALL elements."""
    n_elems = pred.size  # static; torch.mean divides by the full element count

    pred2d = _to_slab(pred)
    gt2d = _to_slab(gt)
    rows = pred2d.shape[0]

    tile_rows = rows if rows <= _MAX_TILE_ROWS else _MAX_TILE_ROWS
    total_blocks = -(-rows // tile_rows)
    num_shards = 2 if (total_blocks >= 2 and total_blocks % 2 == 0) else 1
    blocks_per_shard = total_blocks // num_shards

    in_spec = pl.BlockSpec(
        (tile_rows, _LANE), lambda c, i: (c * blocks_per_shard + i, 0))
    out_spec = pl.BlockSpec(
        (1, _SUBLANE, _LANE), lambda c, i: (c, 0, 0))

    kernel_kwargs = dict(
        n_valid=n_elems, tile_rows=tile_rows, blocks_per_shard=blocks_per_shard)
    common = dict(
        out_shape=jax.ShapeDtypeStruct((num_shards, _SUBLANE, _LANE), jnp.float32),
        compiler_params=pltpu.CompilerParams(
            dimension_semantics=("parallel", "arbitrary")),
    )

    if mask is None:
        partials = pl.pallas_call(
            functools.partial(_bce_sum_kernel, **kernel_kwargs),
            grid_spec=pltpu.PrefetchScalarGridSpec(
                num_scalar_prefetch=0,
                grid=(num_shards, blocks_per_shard),
                in_specs=[in_spec, in_spec],
                out_specs=out_spec,
            ),
            **common,
        )(pred2d, gt2d)
    else:
        mask2d = _to_slab(mask)
        partials = pl.pallas_call(
            functools.partial(_bce_sum_masked_kernel, **kernel_kwargs),
            grid_spec=pltpu.PrefetchScalarGridSpec(
                num_scalar_prefetch=0,
                grid=(num_shards, blocks_per_shard),
                in_specs=[in_spec, in_spec, in_spec],
                out_specs=out_spec,
            ),
            **common,
        )(pred2d, gt2d, mask2d)

    return jnp.sum(partials) / jnp.float32(n_elems)


def _reference(pred, gt, mask=None):
    x = pred.astype(jnp.float32)
    y = gt.astype(jnp.float32)
    loss = jnp.maximum(x, 0.0) - x * y + jnp.log1p(jnp.exp(-jnp.abs(x)))
    if mask is not None:
        loss = loss * mask.astype(jnp.float32)
    return jnp.mean(loss)


if __name__ == "__main__":
    key = jax.random.PRNGKey(0)
    k1, k2, k3 = jax.random.split(key, 3)

    # NCHW inputs, small shapes
    shape = (2, 4, 16, 16)
    pred = jax.random.normal(k1, shape, dtype=jnp.float32) * 2.0
    gt = (jax.random.uniform(k2, shape) > 0.5).astype(jnp.float32)
    mask = (jax.random.uniform(k3, shape) > 0.3).astype(jnp.float32)

    # No-mask case
    out_nomask = bce_loss(pred, gt)
    jax.block_until_ready(out_nomask)
    ref_nomask = _reference(pred, gt)

    # Masked case
    out_mask = bce_loss(pred, gt, mask)
    jax.block_until_ready(out_mask)
    ref_mask = _reference(pred, gt, mask)

    assert jnp.allclose(out_nomask, ref_nomask, rtol=1e-5, atol=1e-5), (
        out_nomask, ref_nomask)
    assert jnp.allclose(out_mask, ref_mask, rtol=1e-5, atol=1e-5), (
        out_mask, ref_mask)

    print("KERNEL_OK")
</pallas_src>

<mosaic_0001>
module attributes {stable_mosaic.version = 11 : i64} {
  func.func @_bce_sum_kernel(%arg0: i32, %arg1: i32, %arg2: memref<16x128xf32, #tpu.memory_space<vmem>>, %arg3: memref<16x128xf32, #tpu.memory_space<vmem>>, %arg4: memref<1x8x128xf32, #tpu.memory_space<vmem>>) attributes {dimension_semantics = [#tpu.dimension_semantics<parallel>, #tpu.dimension_semantics<arbitrary>], iteration_bounds = array<i64: 1, 1>, scalar_prefetch = 0 : i64, scratch_operands = 0 : i64, tpu.core_type = #tpu.core_type<tc>, window_params = [{transform_indices = @transform_0, window_bounds = array<i64: 16, 128>}, {transform_indices = @transform_1, window_bounds = array<i64: 16, 128>}, {transform_indices = @transform_2, window_bounds = array<i64: 1, 8, 128>}]} {
    %c1_i32 = arith.constant 1 : i32
    %0 = arith.muli %arg0, %c1_i32 : i32
    %1 = arith.addi %0, %arg1 : i32
    %c2048_i32 = arith.constant 2048 : i32
    %2 = arith.muli %1, %c2048_i32 : i32
    %3 = tpu.iota {dimensions = array<i32: 0>} : vector<16x128xi32>
    %4 = tpu.iota {dimensions = array<i32: 1>} : vector<16x128xi32>
    %c128_i32 = arith.constant 128 : i32
    %5 = vector.broadcast %c128_i32 : i32 to vector<16x128xi32>
    %6 = arith.muli %3, %5 : vector<16x128xi32>
    %7 = vector.broadcast %2 : i32 to vector<16x128xi32>
    %8 = arith.addi %7, %6 : vector<16x128xi32>
    %9 = arith.addi %8, %4 : vector<16x128xi32>
    %c2048_i32_0 = arith.constant 2048 : i32
    %10 = vector.broadcast %c2048_i32_0 : i32 to vector<16x128xi32>
    %11 = arith.cmpi slt, %9, %10 : vector<16x128xi32>
    %c0 = arith.constant 0 : index
    %c0_1 = arith.constant 0 : index
    %12 = vector.load %arg2[%c0, %c0_1] : memref<16x128xf32, #tpu.memory_space<vmem>>, vector<16x128xf32>
    %cst = arith.constant 0.000000e+00 : f32
    %13 = vector.broadcast %cst : f32 to vector<16x128xf32>
    %14 = arith.select %11, %12, %13 : vector<16x128xi1>, vector<16x128xf32>
    %c0_2 = arith.constant 0 : index
    %c0_3 = arith.constant 0 : index
    %15 = vector.load %arg3[%c0_2, %c0_3] : memref<16x128xf32, #tpu.memory_space<vmem>>, vector<16x128xf32>
    %cst_4 = arith.constant 0.000000e+00 : f32
    %16 = vector.broadcast %cst_4 : f32 to vector<16x128xf32>
    %17 = arith.select %11, %15, %16 : vector<16x128xi1>, vector<16x128xf32>
    %cst_5 = arith.constant 0.000000e+00 : f32
    %18 = vector.broadcast %cst_5 : f32 to vector<16x128xf32>
    %19 = arith.maximumf %14, %18 : vector<16x128xf32>
    %20 = arith.mulf %14, %17 : vector<16x128xf32>
    %21 = arith.subf %19, %20 : vector<16x128xf32>
    %22 = math.absf %14 : vector<16x128xf32>
    %cst_6 = arith.constant 0.000000e+00 : f32
    %23 = vector.broadcast %cst_6 : f32 to vector<16x128xf32>
    %24 = arith.subf %23, %22 : vector<16x128xf32>
    %25 = math.exp %24 : vector<16x128xf32>
    %26 = math.log1p %25 : vector<16x128xf32>
    %27 = arith.addf %21, %26 : vector<16x128xf32>
    %cst_7 = arith.constant 0.000000e+00 : f32
    %28 = vector.broadcast %cst_7 : f32 to vector<16x128xf32>
    %29 = arith.select %11, %27, %28 : vector<16x128xi1>, vector<16x128xf32>
    %c0_i32 = arith.constant 0 : i32
    %30 = arith.cmpi eq, %arg1, %c0_i32 : i32
    %31 = arith.extui %30 : i1 to i32
    %c0_i32_8 = arith.constant 0 : i32
    %32 = arith.cmpi ne, %31, %c0_i32_8 : i32
    scf.if %32 {
      %cst_16 = arith.constant 0.000000e+00 : f32
      %39 = vector.broadcast %cst_16 : f32 to vector<1x8x128xf32>
      %c0_17 = arith.constant 0 : index
      %c0_18 = arith.constant 0 : index
      %c0_19 = arith.constant 0 : index
      %40 = vector.load %arg4[%c0_17, %c0_18, %c0_19] : memref<1x8x128xf32, #tpu.memory_space<vmem>>, vector<1x8x128xf32>
      tpu.vector_store %arg4[%c0_17, %c0_18, %c0_19], %39 {strides = array<i32>} : memref<1x8x128xf32, #tpu.memory_space<vmem>>, vector<1x8x128xf32>,
    } else {
    }
    %33 = vector.shape_cast %29 : vector<16x128xf32> to vector<2x8x128xf32>
    %cst_9 = arith.constant dense<0.000000e+00> : vector<8x128xf32>
    %34 = vector.multi_reduction <add>, %33, %cst_9 [0] : vector<2x8x128xf32> to vector<8x128xf32>
    %c0_10 = arith.constant 0 : index
    %c0_11 = arith.constant 0 : index
    %c0_12 = arith.constant 0 : index
    %35 = vector.load %arg4[%c0_10, %c0_11, %c0_12] : memref<1x8x128xf32, #tpu.memory_space<vmem>>, vector<1x8x128xf32>
    %36 = vector.shape_cast %34 : vector<8x128xf32> to vector<1x8x128xf32>
    %37 = arith.addf %35, %36 : vector<1x8x128xf32>
    %c0_13 = arith.constant 0 : index
    %c0_14 = arith.constant 0 : index
    %c0_15 = arith.constant 0 : index
    %38 = vector.load %arg4[%c0_13, %c0_14, %c0_15] : memref<1x8x128xf32, #tpu.memory_space<vmem>>, vector<1x8x128xf32>
    tpu.vector_store %arg4[%c0_13, %c0_14, %c0_15], %37 {strides = array<i32>} : memref<1x8x128xf32, #tpu.memory_space<vmem>>, vector<1x8x128xf32>,
    return
  }
  func.func @transform_0(%arg0: i32, %arg1: i32) -> (i32, i32) {
    %c1_i32 = arith.constant 1 : i32
    %0 = arith.muli %arg0, %c1_i32 : i32
    %1 = arith.addi %0, %arg1 : i32
    %c0_i32 = arith.constant 0 : i32
    %c0_i32_0 = arith.constant 0 : i32
    return %1, %c0_i32 : i32, i32
  }
  func.func @transform_1(%arg0: i32, %arg1: i32) -> (i32, i32) {
    %c1_i32 = arith.constant 1 : i32
    %0 = arith.muli %arg0, %c1_i32 : i32
    %1 = arith.addi %0, %arg1 : i32
    %c0_i32 = arith.constant 0 : i32
    %c0_i32_0 = arith.constant 0 : i32
    return %1, %c0_i32 : i32, i32
  }
  func.func @transform_2(%arg0: i32, %arg1: i32) -> (i32, i32, i32) {
    %c0_i32 = arith.constant 0 : i32
    %c0_i32_0 = arith.constant 0 : i32
    %c0_i32_1 = arith.constant 0 : i32
    return %arg0, %c0_i32, %c0_i32_0 : i32, i32, i32
  }
}

</mosaic_0001>

<llo_original>
// kernel: bce_loss.1
$region0: #{bce_loss.1}
  #allocation0 [shape = 'u32[]', space=smem, size = 0x4, offset = 0x4, fixed_abs, tag = 'smem constant byte address 0x4 - core index']
  #allocation1 [shape = 'u32[72,128]{1,0:T(1,128)}', space=vmem, size = 0x9000, scoped, tag = 'internal scratch']
  %s0 = inlined_call_operand.vmem [shape: f32[16,128], index: 0, kind: input, shape index: {}]
  %s1 = inlined_call_operand.vmem [shape: f32[16,128], index: 1, kind: input, shape index: {}]
  %s2 = inlined_call_operand.vmem [shape: f32[1,8,128], index: 2, kind: output, shape index: {}]
  %s3 = sld [smem:[#allocation0]]
  $region22: #{bce_loss.1} parent=0
    _
  %s5 = ssub.s32 1, %s3
  %s6 = scalar_select 0, %s5, %s3
  // Predicated region
  $region2: #{bce_loss.1} parent=0 // pred_check
    _
  $region3: #{bce_loss.1} parent=0 // pred_check_branch
    %8 = sbr.rel (0) target = $region5
  $region4: #{bce_loss.1} parent=0 // pred_region
    %s9 = sadd.s32 0, 0
    %s10 = smul.u32 2, %s9
    %p11 = scmp.lt.s32.totalorder %s10, 1
    %s12 = scalar_select %p11, %s10, 1
    %s13 = smul.addr %s12, 8
    %s14 = scalar_lea.vmem %s0, %s13
    %s15 = sadd.s32 0, 0
    %s16 = smul.u32 2, %s15
  $region5: #{bce_loss.1} parent=0 // pred_fallthru
    _
  // Predicated region
  $region6: #{bce_loss.1} parent=0 // pred_check
    _
  $region7: #{bce_loss.1} parent=0 // pred_check_branch
    %18 = sbr.rel (0) target = $region9
  $region8: #{bce_loss.1} parent=0 // pred_region
    %s19 = sadd.s32 0, 0
    %s20 = smul.u32 2, %s19
    %p21 = scmp.lt.s32.totalorder %s20, 1
    %s22 = scalar_select %p21, %s20, 1
    %s23 = smul.addr %s22, 8
    %s24 = scalar_lea.vmem %s1, %s23
    %s25 = sadd.s32 0, 0
    %s26 = smul.u32 2, %s25
  $region9: #{bce_loss.1} parent=0 // pred_fallthru
    _
  %s27 = sadd.s32 0, 0
  %s28 = smul.u32 2, %s27
  %p29 = scmp.lt.s32.totalorder %s28, 1
  %s30 = scalar_select %p29, %s28, 1
  %s31 = smul.addr %s30, 8
  %s32 = scalar_lea.vmem %s0, %s31
  %s33 = sadd.s32 0, 0
  %s34 = smul.u32 2, %s33
  %p35 = scmp.lt.s32.totalorder %s34, 1
  %s36 = scalar_select %p35, %s34, 1
  %s37 = smul.addr %s36, 8
  %s38 = scalar_lea.vmem %s1, %s37
  %s39 = sadd.s32 0, 0
  %s40 = smul.u32 2, %s39
  %p41 = scmp.lt.s32.totalorder %s40, 1
  %s42 = scalar_select %p41, %s40, 1
  %s43 = smul.addr %s42, 8
  %s44 = scalar_lea.vmem %s0, %s43
  %s45 = sadd.s32 0, 0
  %s46 = smul.u32 2, %s45
  %s47 = sadd.s32 0, 0
  %s48 = smul.u32 2, %s47
  %p49 = scmp.lt.s32.totalorder %s48, 1
  %s50 = scalar_select %p49, %s48, 1
  %s51 = smul.addr %s50, 8
  %s52 = scalar_lea.vmem %s1, %s51
  %s53 = sadd.s32 0, 0
  %s54 = smul.u32 2, %s53
  %s55 = sadd.s32 0, 0
  %s56 = smul.u32 %s55, 2048
  %v57 = vlaneseq
  %v58 = vshrl.u32 %v57, 7
  %v59 = vadd.s32 %v58, 8
  %v60 = vlaneseq
  %v61 = vand.u32 %v60, 127
  %v62 = vmul.u32 %v58, 128
  %v63 = vmul.u32 %v59, 128
  %v64 = vstv %s56
  %v65 = vadd.s32 %v64, %v62
  %v66 = vadd.s32 %v64, %v63
  %v67 = vadd.s32 %v65, %v61
  %v68 = vadd.s32 %v66, %v61
  %vm69 = vcmp.lt.s32.totalorder %v67, 2048
  %vm70 = vcmp.lt.s32.totalorder %v68, 2048
  %v71 = vld [vmem:[%s44] sm:$0xff]
  %v72 = vld [vmem:[%s44 + $0x8] sm:$0xff]
  %v73 = vsel %vm69, %v71, 0.0
  %v74 = vsel %vm70, %v72, 0.0
  %v75 = vld [vmem:[%s52] sm:$0xff]
  %v76 = vld [vmem:[%s52 + $0x8] sm:$0xff]
  %v77 = vsel %vm69, %v75, 0.0
  %v78 = vsel %vm70, %v76, 0.0
  %v79 = vmax.f32 %v73, 0.0
  %v80 = vmax.f32 %v74, 0.0
  %v81 = vmul.f32 %v73, %v77
  %v82 = vmul.f32 %v74, %v78
  %v83 = vsub.f32 %v79, %v81
  %v84 = vsub.f32 %v80, %v82
  %v85 = vand.u32 2147483647, %v73
  %v86 = vand.u32 2147483647, %v74
  %v87 = vsub.f32 0.0, %v85
  %v88 = vsub.f32 0.0, %v86
  %v89 = vmul.f32 %v87, 1.442695
  %v90 = vpow.pop %v89
  %v91 = vmul.f32 %v88, 1.442695
  %v92 = vpow.pop %v91
  %v93 = vadd.f32 %v90, 1.0
  %v94 = vlog2.pop %v93
  %v95 = vmul.f32 %v94, 0.6931472
  %v96 = vmul.f32 -0.5, %v90
  %v97 = vadd.f32 %v96, 1.0
  %v98 = vmul.f32 %v97, %v90
  %v99 = vand.u32 2147483647, %v90
  %vm100 = vcmp.lt.f32.partialorder %v99, 0.0004427343
  %v101 = vsel %vm100, %v98, %v95
  %v102 = vadd.f32 %v92, 1.0
  %v103 = vlog2.pop %v102
  %v104 = vmul.f32 %v103, 0.6931472
  %v105 = vmul.f32 -0.5, %v92
  %v106 = vadd.f32 %v105, 1.0
  %v107 = vmul.f32 %v106, %v92
  %v108 = vand.u32 2147483647, %v92
  %vm109 = vcmp.lt.f32.partialorder %v108, 0.0004427343
  %v110 = vsel %vm109, %v107, %v104
  %v111 = vadd.f32 %v83, %v101
  %v112 = vadd.f32 %v84, %v110
  %v113 = vsel %vm69, %v111, 0.0
  %v114 = vsel %vm70, %v112, 0.0
  %p115 = scmp.eq.s32.totalorder 0, 0
  // Predicated region
  $region10: #{bce_loss.1} parent=0 // pred_check
    %p116 = pneg %p115
  $region11: #{bce_loss.1} parent=0 // pred_check_branch
    %118 = sbr.rel (%p116) target = $region13
  $region12: #{bce_loss.1} parent=0 // pred_region
    %119 = vst [vmem:[%s2] sm:$0xff] 0.0
  $region13: #{bce_loss.1} parent=0 // pred_fallthru
    _
  %v120 = vadd.f32 %v113, %v114
  %v121 = vld [vmem:[%s2] sm:$0xff]
  %v122 = vadd.f32 %v121, %v120
  %123 = vst [vmem:[%s2] sm:$0xff] %v122
  // Predicated region
  $region14: #{bce_loss.1} parent=0 // pred_check
    _
  $region15: #{bce_loss.1} parent=0 // pred_check_branch
    %125 = sbr.rel (0) target = $region17
  $region16: #{bce_loss.1} parent=0 // pred_region
    _
  $region17: #{bce_loss.1} parent=0 // pred_fallthru
    _
  // Predicated region
  $region18: #{bce_loss.1} parent=0 // pred_check
    _
  $region19: #{bce_loss.1} parent=0 // pred_check_branch
    %127 = sbr.rel (0) target = $region21
  $region20: #{bce_loss.1} parent=0 // pred_region
    _
  $region21: #{bce_loss.1} parent=0 // pred_fallthru
    _

</llo_original>
